<compile_context>
chip_gen: v6e
topology: v6e:2x2x1
jax: 0.10.0
libtpu: 0.0.40
codegen_flags: <defaults>
</compile_context>

<pallas_src>
import functools

import jax
import jax.numpy as jnp
from jax.experimental import pallas as pl
from jax.experimental.pallas import tpu as pltpu


def _round_up(x, m):
    return (x + m - 1) // m * m


# ----------------------------- Pallas kernel ---------------------------------
def _agg_kernel(a_ref, h_ref, o_ref, acc_ref, *, tk, apply_relu):
    """One grid step of  act(A @ H).

    grid = (num_row_tiles, num_k_tiles); axis 1 is the contraction over source
    nodes, accumulated in an f32 VMEM scratch that stays resident across k.
    A is streamed (bf16 tiles); H is VMEM-resident bf16 and sliced with pl.ds.
    """
    k = pl.program_id(1)

    @pl.when(k == 0)
    def _():
        acc_ref[...] = jnp.zeros_like(acc_ref)

    start = pl.multiple_of(k * tk, tk)
    h_blk = h_ref[pl.ds(start, tk), :]                      # bf16 [tk, c_pad]
    acc_ref[...] += jnp.dot(a_ref[...], h_blk,
                            preferred_element_type=jnp.float32)

    @pl.when(k == pl.num_programs(1) - 1)
    def _():
        y = acc_ref[...]
        if apply_relu:
            y = jnp.maximum(y, 0.0)
        o_ref[...] = y.astype(o_ref.dtype)


def _aggregate(a_bf16, h_bf16, *, apply_relu, out_dtype, tm, tk, vmem_limit):
    """act(A @ H): A [n_pad, n_pad] bf16 (streamed), H [n_pad, c_pad] bf16 (resident)."""
    n_pad = a_bf16.shape[0]
    c_pad = h_bf16.shape[1]
    kernel = functools.partial(_agg_kernel, tk=tk, apply_relu=apply_relu)
    return pl.pallas_call(
        kernel,
        out_shape=jax.ShapeDtypeStruct((n_pad, c_pad), out_dtype),
        grid_spec=pltpu.PrefetchScalarGridSpec(
            num_scalar_prefetch=0,
            grid=(n_pad // tm, n_pad // tk),
            in_specs=[
                # A tile: the only HBM-streamed operand.
                pl.BlockSpec((tm, tk), lambda i, k: (i, k)),
                # H: constant block index -> fetched once, resident in VMEM.
                pl.BlockSpec((n_pad, c_pad), lambda i, k: (0, 0)),
            ],
            out_specs=pl.BlockSpec((tm, c_pad), lambda i, k: (i, 0)),
            scratch_shapes=[pltpu.VMEM((tm, c_pad), jnp.float32)],
        ),
        compiler_params=pltpu.CompilerParams(
            # Row tiles are independent -> megacore-parallel on v7x; the
            # contraction axis carries the accumulator -> arbitrary.
            dimension_semantics=("parallel", "arbitrary"),
            vmem_limit_bytes=vmem_limit,
        ),
    )(a_bf16, h_bf16)


# ------------------------------ JAX glue --------------------------------------
def _choose_tiles(n):
    """Row / contraction tile sizes, padded node count, VMEM limit.

    n_pad is rounded only to 256 (never up to TK); TK/TM are chosen as
    divisors of n_pad, sized from the device's VMEM capacity.
    """
    n_pad = _round_up(max(n, 1), 256)

    try:
        vmem_cap = int(pltpu.get_tpu_info().vmem_capacity_bytes)
    except Exception:  # pragma: no cover - conservative fallback
        vmem_cap = 64 * 1024 * 1024

    big_vmem = vmem_cap >= 100 * 1024 * 1024      # v5e/v6e: 128 MiB, v7x: 64 MiB
    tk_target = 8192 if big_vmem else 4096
    tm_target = 512

    # Row tile: keep >= 2 tiles so the "parallel" axis can shard across cores.
    tm = n_pad
    for cand in (tm_target, 256, 128):
        if cand <= n_pad and n_pad % cand == 0 and n_pad // cand >= 2:
            tm = cand
            break

    # Contraction tile: largest 256-multiple <= target that divides n_pad.
    tk = 256
    for cand in (tk_target, 4096, 2048, 1024, 512, 256):
        if cand <= min(tk_target, n_pad) and n_pad % cand == 0:
            tk = cand
            break

    # Explicit VMEM limit with headroom (scoped defaults: 16/32/32 MiB).
    vmem_limit = min(vmem_cap * 3 // 4, 96 * 1024 * 1024)
    vmem_limit = max(vmem_limit, 32 * 1024 * 1024)
    return tm, tk, n_pad, vmem_limit


def build_norm_adjacency(edge_index, num_nodes, n_pad, alpha=1.0, beta=0.0):
    """Dense [n_pad, n_pad] bf16 A such that out = A @ h reproduces
    propagate(edge_index, x=h, norm=norm) with aggr='add' and self-loops.
    Scatter in f32, cast to bf16 at the end (fuses under jit)."""
    row = edge_index[0]
    col = edge_index[1]
    loops = jnp.arange(num_nodes, dtype=edge_index.dtype)
    row = jnp.concatenate([row, loops])
    col = jnp.concatenate([col, loops])
    in_deg = jnp.zeros((num_nodes,), jnp.float32).at[col].add(1.0)
    out_deg = jnp.zeros((num_nodes,), jnp.float32).at[row].add(1.0)
    norm = jnp.power(in_deg, -alpha)[col] * jnp.power(out_deg, -beta)[row]
    adj = jnp.zeros((n_pad, n_pad), jnp.float32).at[col, row].add(norm)
    return adj.astype(jnp.bfloat16)


def init_linear_params(key, in_c, out_c):
    """Deterministic torch.nn.Linear-style init; weight stored transposed [in, out]."""
    kw, kb = jax.random.split(key)
    bound = 1.0 / jnp.sqrt(jnp.float32(in_c))
    w = jax.random.uniform(kw, (in_c, out_c), jnp.float32, -bound, bound)
    b = jax.random.uniform(kb, (1, out_c), jnp.float32, -bound, bound)
    return w, b


def source_gcn_encoder(x, edge_index, params, alpha=1.0, beta=0.0):
    w1, b1, w2, b2 = params
    n, cin = x.shape
    hid = w1.shape[1]
    cout = w2.shape[1]

    tm, tk, n_pad, vmem_limit = _choose_tiles(n)
    hid_pad = _round_up(hid, 128)     # lane-dense intermediate
    cout_pad = _round_up(cout, 128)   # lane-dense output (unmasked vst)

    # Zero-padded operands.  Padded node rows of H carry the bias, but A's
    # columns for padded nodes are zero, so they never contribute.
    x_p = jnp.zeros((n_pad, cin), jnp.float32).at[:n].set(x)
    w1_p = jnp.zeros((cin, hid_pad), jnp.float32).at[:, :hid].set(w1)
    b1_p = jnp.zeros((1, hid_pad), jnp.float32).at[:, :hid].set(b1)
    w2_p = jnp.zeros((hid_pad, cout_pad), jnp.float32).at[:hid, :cout].set(w2)
    b2_p = jnp.zeros((1, cout_pad), jnp.float32).at[:, :cout].set(b2)

    # bf16 adjacencies (build + cast fuse under jit): halves the dominant A
    # HBM stream on the bandwidth-bound aggregation matmuls.
    a1 = build_norm_adjacency(edge_index, n, n_pad, alpha, beta)
    flipped = jnp.flip(edge_index, axis=0)            # torch.flip(edge_index, [0])
    a2 = build_norm_adjacency(flipped, n, n_pad, alpha, beta)

    # Hoisted per-node linears: computed ONCE (tiny K), cast to bf16, then the
    # Pallas kernel only does the HBM-bound A @ H with a resident bf16 RHS.
    h1 = (x_p @ w1_p + b1_p).astype(jnp.bfloat16)
    c1 = _aggregate(a1, h1, apply_relu=True, out_dtype=jnp.bfloat16,
                    tm=tm, tk=tk, vmem_limit=vmem_limit)
    h2 = (c1.astype(jnp.float32) @ w2_p + b2_p).astype(jnp.bfloat16)
    out = _aggregate(a2, h2, apply_relu=False, out_dtype=jnp.float32,
                     tm=tm, tk=tk, vmem_limit=vmem_limit)
    return out[:n, :cout]


def _reference(x, edge_index, params, alpha=1.0, beta=0.0):
    """Pure-jnp reference mirroring the kernel's bf16 casts (f32 accumulation)."""
    w1, b1, w2, b2 = params
    n = x.shape[0]
    a1 = build_norm_adjacency(edge_index, n, n, alpha, beta)
    a2 = build_norm_adjacency(jnp.flip(edge_index, axis=0), n, n, alpha, beta)
    h1 = (x @ w1 + b1).astype(jnp.bfloat16)
    c1 = jnp.maximum(jnp.dot(a1, h1, preferred_element_type=jnp.float32),
                     0.0).astype(jnp.bfloat16)
    h2 = (c1.astype(jnp.float32) @ w2 + b2).astype(jnp.bfloat16)
    return jnp.dot(a2, h2, preferred_element_type=jnp.float32)


# --------------------------------- main ----------------------------------------
if __name__ == "__main__":
    key = jax.random.PRNGKey(0)
    k_x, k_e1, k_e2, k_l1, k_l2 = jax.random.split(key, 5)

    num_nodes = 16
    num_edges = 40
    in_channels, hidden_channels, out_channels = 8, 32, 16

    x = jax.random.normal(k_x, (num_nodes, in_channels), jnp.float32)
    src = jax.random.randint(k_e1, (num_edges,), 0, num_nodes, jnp.int32)
    dst = jax.random.randint(k_e2, (num_edges,), 0, num_nodes, jnp.int32)
    edge_index = jnp.stack([src, dst], axis=0)        # [2, E]

    w1, b1 = init_linear_params(k_l1, in_channels, hidden_channels)
    w2, b2 = init_linear_params(k_l2, hidden_channels, out_channels)
    params = (w1, b1, w2, b2)

    fwd = jax.jit(lambda xx, ee: source_gcn_encoder(xx, ee, params))
    out = jax.block_until_ready(fwd(x, edge_index))
    ref = jax.block_until_ready(_reference(x, edge_index, params))

    assert out.shape == (num_nodes, out_channels)
    assert jnp.allclose(out, ref, atol=1e-2, rtol=1e-2), "Pallas output mismatch vs reference"

    print("KERNEL_OK")
</pallas_src>

<mosaic_0001>
module attributes {stable_mosaic.version = 11 : i64} {
  func.func private @main(%arg0: i32) attributes {dimension_semantics = [#tpu.dimension_semantics<core_parallel>], iteration_bounds = array<i64: 2>, tpu.core_type = #tpu.core_type<sc_scalar_subcore>, window_params = []} {
    return
  }
}

module attributes {stable_mosaic.version = 11 : i64} {
  func.func private @main(%arg0: i32) attributes {dimension_semantics = [#tpu.dimension_semantics<core_parallel>], iteration_bounds = array<i64: 2>, tpu.core_type = #tpu.core_type<sc_scalar_subcore>, window_params = []} {
    return
  }
}

module attributes {stable_mosaic.version = 11 : i64} {
  func.func @_agg_kernel(%arg0: i32, %arg1: i32, %arg2: memref<128x256xbf16, #tpu.memory_space<vmem>>, %arg3: memref<256x128xbf16, #tpu.memory_space<vmem>>, %arg4: memref<128x128xbf16, #tpu.memory_space<vmem>>, %arg5: memref<128x128xf32, #tpu.memory_space<vmem>>) attributes {dimension_semantics = [#tpu.dimension_semantics<parallel>, #tpu.dimension_semantics<arbitrary>], iteration_bounds = array<i64: 2, 1>, scalar_prefetch = 0 : i64, scratch_operands = 1 : i64, tpu.core_type = #tpu.core_type<tc>, window_params = [{transform_indices = @transform_0, window_bounds = array<i64: 128, 256>}, {pipeline_mode = #tpu.pipeline_mode<synchronous>, transform_indices = @transform_1, window_bounds = array<i64: 256, 128>}, {transform_indices = @transform_2, window_bounds = array<i64: 128, 128>}]} {
    %c0_i32 = arith.constant 0 : i32
    %0 = arith.cmpi eq, %arg1, %c0_i32 : i32
    %1 = arith.extui %0 : i1 to i32
    %c0_i32_0 = arith.constant 0 : i32
    %2 = arith.cmpi ne, %1, %c0_i32_0 : i32
    scf.if %2 {
      %cst_9 = arith.constant 0.000000e+00 : f32
      %15 = vector.broadcast %cst_9 : f32 to vector<128x128xf32>
      %c0_10 = arith.constant 0 : index
      %c0_11 = arith.constant 0 : index
      %16 = vector.load %arg5[%c0_10, %c0_11] : memref<128x128xf32, #tpu.memory_space<vmem>>, vector<128x128xf32>
      tpu.vector_store %arg5[%c0_10, %c0_11], %15 {strides = array<i32>} : memref<128x128xf32, #tpu.memory_space<vmem>>, vector<128x128xf32>,
    } else {
    }
    %c256_i32 = arith.constant 256 : i32
    %3 = arith.muli %arg1, %c256_i32 : i32
    %4 = tpu.assume_multiple %3, 256 : i32
    %5 = arith.index_cast %4 : i32 to index
    %c0 = arith.constant 0 : index
    %6 = vector.load %arg3[%5, %c0] : memref<256x128xbf16, #tpu.memory_space<vmem>>, vector<256x128xbf16>
    %c0_1 = arith.constant 0 : index
    %c0_2 = arith.constant 0 : index
    %7 = vector.load %arg5[%c0_1, %c0_2] : memref<128x128xf32, #tpu.memory_space<vmem>>, vector<128x128xf32>
    %c0_3 = arith.constant 0 : index
    %c0_4 = arith.constant 0 : index
    %8 = vector.load %arg2[%c0_3, %c0_4] : memref<128x256xbf16, #tpu.memory_space<vmem>>, vector<128x256xbf16>
    %cst = arith.constant dense<0.000000e+00> : vector<128x128xf32>
    %9 = tpu.matmul %8, %6, %cst {dimension_numbers = #tpu.dot_dimension_numbers<[1], [0], [0], [1], [0, 0, 1, 1], [], []>} : vector<128x256xbf16>, vector<256x128xbf16>, vector<128x128xf32> -> vector<128x128xf32>
    %10 = arith.addf %7, %9 : vector<128x128xf32>
    %c0_5 = arith.constant 0 : index
    %c0_6 = arith.constant 0 : index
    %11 = vector.load %arg5[%c0_5, %c0_6] : memref<128x128xf32, #tpu.memory_space<vmem>>, vector<128x128xf32>
    tpu.vector_store %arg5[%c0_5, %c0_6], %10 {strides = array<i32>} : memref<128x128xf32, #tpu.memory_space<vmem>>, vector<128x128xf32>,
    %c0_i32_7 = arith.constant 0 : i32
    %12 = arith.cmpi eq, %arg1, %c0_i32_7 : i32
    %13 = arith.extui %12 : i1 to i32
    %c0_i32_8 = arith.constant 0 : i32
    %14 = arith.cmpi ne, %13, %c0_i32_8 : i32
    scf.if %14 {
      %c0_9 = arith.constant 0 : index
      %c0_10 = arith.constant 0 : index
      %15 = vector.load %arg5[%c0_9, %c0_10] : memref<128x128xf32, #tpu.memory_space<vmem>>, vector<128x128xf32>
      %cst_11 = arith.constant 0.000000e+00 : f32
      %16 = vector.broadcast %cst_11 : f32 to vector<128x128xf32>
      %17 = arith.maximumf %15, %16 : vector<128x128xf32>
      %18 = arith.truncf %17 : vector<128x128xf32> to vector<128x128xbf16>
      %c0_12 = arith.constant 0 : index
      %c0_13 = arith.constant 0 : index
      %19 = vector.load %arg4[%c0_12, %c0_13] : memref<128x128xbf16, #tpu.memory_space<vmem>>, vector<128x128xbf16>
      tpu.vector_store %arg4[%c0_12, %c0_13], %18 {strides = array<i32>} : memref<128x128xbf16, #tpu.memory_space<vmem>>, vector<128x128xbf16>,
    } else {
    }
    return
  }
  func.func @transform_0(%arg0: i32, %arg1: i32) -> (i32, i32) {
    %c0_i32 = arith.constant 0 : i32
    return %arg0, %arg1 : i32, i32
  }
  func.func @transform_1(%arg0: i32, %arg1: i32) -> (i32, i32) {
    %c0_i32 = arith.constant 0 : i32
    %c0_i32_0 = arith.constant 0 : i32
    %c0_i32_1 = arith.constant 0 : i32
    return %c0_i32, %c0_i32_0 : i32, i32
  }
  func.func @transform_2(%arg0: i32, %arg1: i32) -> (i32, i32) {
    %c0_i32 = arith.constant 0 : i32
    %c0_i32_0 = arith.constant 0 : i32
    return %arg0, %c0_i32 : i32, i32
  }
}

module attributes {stable_mosaic.version = 11 : i64} {
  func.func @_agg_kernel(%arg0: i32, %arg1: i32, %arg2: memref<128x256xbf16, #tpu.memory_space<vmem>>, %arg3: memref<256x128xbf16, #tpu.memory_space<vmem>>, %arg4: memref<128x128xf32, #tpu.memory_space<vmem>>, %arg5: memref<128x128xf32, #tpu.memory_space<vmem>>) attributes {dimension_semantics = [#tpu.dimension_semantics<parallel>, #tpu.dimension_semantics<arbitrary>], iteration_bounds = array<i64: 2, 1>, scalar_prefetch = 0 : i64, scratch_operands = 1 : i64, tpu.core_type = #tpu.core_type<tc>, window_params = [{transform_indices = @transform_0, window_bounds = array<i64: 128, 256>}, {pipeline_mode = #tpu.pipeline_mode<synchronous>, transform_indices = @transform_1, window_bounds = array<i64: 256, 128>}, {transform_indices = @transform_2, window_bounds = array<i64: 128, 128>}]} {
    %c0_i32 = arith.constant 0 : i32
    %0 = arith.cmpi eq, %arg1, %c0_i32 : i32
    %1 = arith.extui %0 : i1 to i32
    %c0_i32_0 = arith.constant 0 : i32
    %2 = arith.cmpi ne, %1, %c0_i32_0 : i32
    scf.if %2 {
      %cst_9 = arith.constant 0.000000e+00 : f32
      %15 = vector.broadcast %cst_9 : f32 to vector<128x128xf32>
      %c0_10 = arith.constant 0 : index
      %c0_11 = arith.constant 0 : index
      %16 = vector.load %arg5[%c0_10, %c0_11] : memref<128x128xf32, #tpu.memory_space<vmem>>, vector<128x128xf32>
      tpu.vector_store %arg5[%c0_10, %c0_11], %15 {strides = array<i32>} : memref<128x128xf32, #tpu.memory_space<vmem>>, vector<128x128xf32>,
    } else {
    }
    %c256_i32 = arith.constant 256 : i32
    %3 = arith.muli %arg1, %c256_i32 : i32
    %4 = tpu.assume_multiple %3, 256 : i32
    %5 = arith.index_cast %4 : i32 to index
    %c0 = arith.constant 0 : index
    %6 = vector.load %arg3[%5, %c0] : memref<256x128xbf16, #tpu.memory_space<vmem>>, vector<256x128xbf16>
    %c0_1 = arith.constant 0 : index
    %c0_2 = arith.constant 0 : index
    %7 = vector.load %arg5[%c0_1, %c0_2] : memref<128x128xf32, #tpu.memory_space<vmem>>, vector<128x128xf32>
    %c0_3 = arith.constant 0 : index
    %c0_4 = arith.constant 0 : index
    %8 = vector.load %arg2[%c0_3, %c0_4] : memref<128x256xbf16, #tpu.memory_space<vmem>>, vector<128x256xbf16>
    %cst = arith.constant dense<0.000000e+00> : vector<128x128xf32>
    %9 = tpu.matmul %8, %6, %cst {dimension_numbers = #tpu.dot_dimension_numbers<[1], [0], [0], [1], [0, 0, 1, 1], [], []>} : vector<128x256xbf16>, vector<256x128xbf16>, vector<128x128xf32> -> vector<128x128xf32>
    %10 = arith.addf %7, %9 : vector<128x128xf32>
    %c0_5 = arith.constant 0 : index
    %c0_6 = arith.constant 0 : index
    %11 = vector.load %arg5[%c0_5, %c0_6] : memref<128x128xf32, #tpu.memory_space<vmem>>, vector<128x128xf32>
    tpu.vector_store %arg5[%c0_5, %c0_6], %10 {strides = array<i32>} : memref<128x128xf32, #tpu.memory_space<vmem>>, vector<128x128xf32>,
    %c0_i32_7 = arith.constant 0 : i32
    %12 = arith.cmpi eq, %arg1, %c0_i32_7 : i32
    %13 = arith.extui %12 : i1 to i32
    %c0_i32_8 = arith.constant 0 : i32
    %14 = arith.cmpi ne, %13, %c0_i32_8 : i32
    scf.if %14 {
      %c0_9 = arith.constant 0 : index
      %c0_10 = arith.constant 0 : index
      %15 = vector.load %arg5[%c0_9, %c0_10] : memref<128x128xf32, #tpu.memory_space<vmem>>, vector<128x128xf32>
      %c0_11 = arith.constant 0 : index
      %c0_12 = arith.constant 0 : index
      %16 = vector.load %arg4[%c0_11, %c0_12] : memref<128x128xf32, #tpu.memory_space<vmem>>, vector<128x128xf32>
      tpu.vector_store %arg4[%c0_11, %c0_12], %15 {strides = array<i32>} : memref<128x128xf32, #tpu.memory_space<vmem>>, vector<128x128xf32>,
    } else {
    }
    return
  }
  func.func @transform_0(%arg0: i32, %arg1: i32) -> (i32, i32) {
    %c0_i32 = arith.constant 0 : i32
    return %arg0, %arg1 : i32, i32
  }
  func.func @transform_1(%arg0: i32, %arg1: i32) -> (i32, i32) {
    %c0_i32 = arith.constant 0 : i32
    %c0_i32_0 = arith.constant 0 : i32
    %c0_i32_1 = arith.constant 0 : i32
    return %c0_i32, %c0_i32_0 : i32, i32
  }
  func.func @transform_2(%arg0: i32, %arg1: i32) -> (i32, i32) {
    %c0_i32 = arith.constant 0 : i32
    %c0_i32_0 = arith.constant 0 : i32
    return %arg0, %c0_i32 : i32, i32
  }
}

</mosaic_0001>

<llo_original>
// kernel: mul.2
$region0: #{mul.2}
  #allocation0 [shape = 's32[1]{0}', space=sflag, size = 0x4, scoped, tag = 'scoped memory for mul.2']
  %s0 = inlined_call_operand.vmem [shape: f32[56], index: 0, kind: input, shape index: {}]
  %s1 = inlined_call_operand.vmem [shape: f32[56], index: 1, kind: input, shape index: {}]
  %s2 = inlined_call_operand.vmem [shape: f32[56], index: 2, kind: output, shape index: {}]
  %v3 = vld [vmem:[%s0] sm:$0x1]
  %v4 = vld [vmem:[%s1] sm:$0x1]
  %5 = xla_tuple %v3, %v4
  %6 = xla_tuple %5
  %v7 = vmul.f32 %v3, %v4
  %8 = xla_tuple %v7
  %9 = vst [vmem:[%s2] sm:$0x1] %v7

// kernel: _lambda_.3
$region0: #{_lambda_.3}
  #allocation0 [shape = 'u32[]', space=smem, size = 0x4, offset = 0x4, fixed_abs, tag = 'smem constant byte address 0x4 - core index']
  #allocation1 [shape = 'u32[144,128]{1,0:T(1,128)}', space=vmem, size = 0x12000, scoped, tag = 'internal scratch']
  #allocation2 [shape = 'f32[128,128]{1,0:T(8,128)}', space=vmem, size = 0x10000, scoped, tag = 'scratch operand']
  %s0 = inlined_call_operand.vmem [shape: bf16[256,256], index: 0, kind: input, shape index: {}]
  %s1 = inlined_call_operand.vmem [shape: bf16[256,128], index: 1, kind: input, shape index: {}]
  %s2 = inlined_call_operand.vmem [shape: f32[256,128], index: 2, kind: output, shape index: {}]
  %s3 = sld [smem:[#allocation0]]
  $region49: #{_lambda_.3} parent=0
    _
  %s5 = ssub.s32 1, %s3
  %s6 = scalar_select 0, %s5, %s3
  loop: start=0, step=1, limit=4
  $region2: #{_lambda_.3} parent=0 // loop_pre_header
    _
  $region3: #{_lambda_.3} parent=0 // loop_header
    %s8 = sphi 0, %s12
    %p9 = scmp.ge.s32.totalorder %s8, 4
    %s15 = sphi 0, %s27
    %s16 = sphi 0, %s23
    %s17 = sphi 0, %s15
    %s18 = sphi 0, %s16
    %s19 = sphi 0, %s17
    %s20 = sphi 0, %s18
    %s32 = sphi 0, %s34
    %s35 = sphi 0, %s32
    %s36 = sphi 0, %s35
    %s52 = sphi 0, %s36
    %s56 = sphi 0, %s56
    %s58 = sphi 0, %s56
    %s59 = sphi 0, %s58
    %s73 = sphi 0, %s59
    %s79 = sphi 0, %s81
    %s82 = sphi 0, %s79
    %s83 = sphi 0, %s82
    %s99 = sphi 0, %s83
  $region4: #{_lambda_.3} parent=0 // loop_header_branch
    %11 = sbr.rel (%p9) target = $region8
  $region5: #{_lambda_.3} parent=0 // loop_body
    %s13 = ssub.s32 %s8, 1
    %s14 = ssub.s32 %s8, 2
    %s21 = sadd.s32 1, %s16
    %p22 = scmp.ge.s32.totalorder %s21, 1
    %s23 = scalar_select %p22, 0, %s21
    %s24 = sadd.s32 1, %s15
    %s25 = scalar_select %p22, %s24, %s15
    %p26 = scmp.ge.s32.totalorder %s25, 2
    %s27 = scalar_select %p26, 0, %s25
    %s28 = ssub.s32 %s15, %s27
    %s29 = ssub.s32 %s16, %s23
    %s30 = sor.u32 %s28, %s29
    %p31 = scmp.eq.s32.totalorder %s30, 0
    %s33 = sadd.s32 %s32, 1
    %s34 = scalar_select %p31, %s32, %s33
    %p37 = pneg %p31
    %p38 = scmp.eq.s32.totalorder %s8, 1
    %p39 = por %p37, %p38
    %p40 = scmp.ne.s32.totalorder %s32, %s35
    %p41 = scmp.eq.s32.totalorder %s8, 0
    %p42 = por %p40, %p41
    %p43 = scmp.ne.s32.totalorder %s32, %s35
    %p44 = scmp.eq.s32.totalorder %s13, 1
    %p45 = por %p43, %p44
    %p46 = scmp.ne.s32.totalorder %s35, %s36
    %p47 = scmp.eq.s32.totalorder %s13, 0
    %p48 = por %p46, %p47
    %p49 = scmp.ne.s32.totalorder %s35, %s36
    %p50 = scmp.eq.s32.totalorder %s14, 1
    %p51 = por %p49, %p50
    %p53 = scmp.ne.s32.totalorder %s36, %s52
    %p54 = scmp.eq.s32.totalorder %s14, 0
    %p55 = por %p53, %p54
    %s57 = sadd.s32 %s56, 1
    %p60 = scmp.eq.s32.totalorder %s8, 1
    %p61 = scmp.ne.s32.totalorder %s56, %s58
    %p62 = scmp.eq.s32.totalorder %s8, 0
    %p63 = por %p61, %p62
    %p64 = scmp.ne.s32.totalorder %s56, %s58
    %p65 = scmp.eq.s32.totalorder %s13, 1
    %p66 = por %p64, %p65
    %p67 = scmp.ne.s32.totalorder %s58, %s59
    %p68 = scmp.eq.s32.totalorder %s13, 0
    %p69 = por %p67, %p68
    %p70 = scmp.ne.s32.totalorder %s58, %s59
    %p71 = scmp.eq.s32.totalorder %s14, 1
    %p72 = por %p70, %p71
    %p74 = scmp.ne.s32.totalorder %s59, %s73
    %p75 = scmp.eq.s32.totalorder %s14, 0
    %p76 = por %p74, %p75
    %s77 = ssub.s32 %s15, %s27
    %p78 = scmp.eq.s32.totalorder %s77, 0
    %s80 = sadd.s32 %s79, 1
    %s81 = scalar_select %p78, %s79, %s80
    %p84 = pneg %p78
    %p85 = scmp.eq.s32.totalorder %s8, 1
    %p86 = por %p84, %p85
    %p87 = scmp.ne.s32.totalorder %s79, %s82
    %p88 = scmp.eq.s32.totalorder %s8, 0
    %p89 = por %p87, %p88
    %p90 = scmp.ne.s32.totalorder %s79, %s82
    %p91 = scmp.eq.s32.totalorder %s13, 1
    %p92 = por %p90, %p91
    %p93 = scmp.ne.s32.totalorder %s82, %s83
    %p94 = scmp.eq.s32.totalorder %s13, 0
    %p95 = por %p93, %p94
    %p96 = scmp.ne.s32.totalorder %s82, %s83
    %p97 = scmp.eq.s32.totalorder %s14, 1
    %p98 = por %p96, %p97
    %p100 = scmp.ne.s32.totalorder %s83, %s99
    %p101 = scmp.eq.s32.totalorder %s14, 0
    %p102 = por %p100, %p101
    %p103 = scmp.le.s32.totalorder 1, %s8
    %p104 = scmp.lt.s32.totalorder %s8, 3
    %p105 = pnand %p103, %p104
    %p106 = pneg %p105
    // Predicated region
    $region9: #{_lambda_.3} parent=5 // pred_check
      _
    $region10: #{_lambda_.3} parent=5 // pred_check_branch
      %108 = sbr.rel (%p105) target = $region12
    $region11: #{_lambda_.3} parent=5 // pred_region
      %s109 = ssub.s32 %s8, 1
      // Predicated region
      $region13: #{_lambda_.3} parent=11 // pred_check
        %p110 = pneg %p69
      $region14: #{_lambda_.3} parent=11 // pred_check_branch
        %112 = sbr.rel (%p110) target = $region16
      $region15: #{_lambda_.3} parent=11 // pred_region
        _
      $region16: #{_lambda_.3} parent=11 // pred_fallthru
        _
    $region12: #{_lambda_.3} parent=5 // pred_fallthru
      _
    %p113 = scmp.lt.s32.totalorder %s8, 2
    // Predicated region
    $region17: #{_lambda_.3} parent=5 // pred_check
      %p114 = pneg %p113
    $region18: #{_lambda_.3} parent=5 // pred_check_branch
      %116 = sbr.rel (%p114) target = $region20
    $region19: #{_lambda_.3} parent=5 // pred_region
      // Predicated region
      $region21: #{_lambda_.3} parent=19 // pred_check
        %p117 = pneg %p42
      $region22: #{_lambda_.3} parent=19 // pred_check_branch
        %119 = sbr.rel (%p117) target = $region24
      $region23: #{_lambda_.3} parent=19 // pred_region
        %s120 = smul.u32 16, %s15
        %s121 = smul.u32 2, %s16
        %p122 = scmp.lt.s32.totalorder %s120, 31
        %s123 = scalar_select %p122, %s120, 31
        %p124 = scmp.lt.s32.totalorder %s121, 1
        %s125 = scalar_select %p124, %s121, 1
        %s126 = smul.addr %s123, 2
        %s127 = sadd.s32 %s125, %s126
        %s128 = smul.addr %s127, 4
        %s129 = scalar_lea.vmem %s0, %s128
        %s130 = smul.u32 16, %s15
        %s131 = smul.u32 2, %s16
      $region24: #{_lambda_.3} parent=19 // pred_fallthru
        _
    $region20: #{_lambda_.3} parent=5 // pred_fallthru
      _
    %p132 = scmp.le.s32.totalorder 1, %s8
    %p133 = scmp.lt.s32.totalorder %s8, 3
    %p134 = pnand %p132, %p133
    %p135 = pneg %p134
    // Predicated region
    $region25: #{_lambda_.3} parent=5 // pred_check
      _
    $region26: #{_lambda_.3} parent=5 // pred_check_branch
      %137 = sbr.rel (%p134) target = $region28
    $region27: #{_lambda_.3} parent=5 // pred_region
      %s138 = ssub.s32 %s8, 1
      %s139 = smul.u32 16, %s17
      %s140 = smul.u32 2, %s18
      %p141 = scmp.lt.s32.totalorder %s139, 31
      %s142 = scalar_select %p141, %s139, 31
      %p143 = scmp.lt.s32.totalorder %s140, 1
      %s144 = scalar_select %p143, %s140, 1
      %s145 = smul.addr %s142, 2
      %s146 = sadd.s32 %s144, %s145
      %s147 = smul.addr %s146, 4
      %s148 = scalar_lea.vmem %s0, %s147
      %p149 = pneg %p48
      %p150 = pneg %p45
      %p151 = pneg %p69
      %p152 = pneg %p66
      %p153 = pneg %p95
      %p154 = pneg %p92
      %s155 = smul.u32 16, %s17
      %p156 = scmp.lt.s32.totalorder %s155, 31
      %s157 = scalar_select %p156, %s155, 31
      %s158 = smul.addr %s157, 8
      %s159 = scalar_lea.vmem %s2, %s158
      %s160 = smul.u32 16, %s17
      %s161 = smul.u32 2, %s18
      %p162 = scmp.lt.s32.totalorder %s160, 31
      %s163 = scalar_select %p162, %s160, 31
      %p164 = scmp.lt.s32.totalorder %s161, 1
      %s165 = scalar_select %p164, %s161, 1
      %s166 = smul.addr %s163, 2
      %s167 = sadd.s32 %s165, %s166
      %s168 = smul.addr %s167, 4
      %s169 = scalar_lea.vmem %s0, %s168
      %s170 = smul.u32 16, %s17
      %s171 = smul.u32 2, %s18
      %s172 = smul.u32 16, %s17
      %p173 = scmp.lt.s32.totalorder %s172, 31
      %s174 = scalar_select %p173, %s172, 31
      %s175 = smul.addr %s174, 8
      %s176 = scalar_lea.vmem %s2, %s175
      %s177 = smul.u32 16, %s17
      %p179 = scmp.eq.s32.totalorder %s18, 0
      // Predicated region
      $region29: #{_lambda_.3} parent=27 // pred_check
        %p180 = pneg %p179
      $region30: #{_lambda_.3} parent=27 // pred_check_branch
        %182 = sbr.rel (%p180) target = $region32
      $region31: #{_lambda_.3} parent=27 // pred_region
        %183 = vst [vmem:[#allocation2] sm:$0xff] 0.0
        %184 = vst [vmem:[#allocation2 + $0x8] sm:$0xff] 0.0
        %185 = vst [vmem:[#allocation2 + $0x10] sm:$0xff] 0.0
        %186 = vst [vmem:[#allocation2 + $0x18] sm:$0xff] 0.0
        %187 = vst [vmem:[#allocation2 + $0x20] sm:$0xff] 0.0
        %188 = vst [vmem:[#allocation2 + $0x28] sm:$0xff] 0.0
        %189 = vst [vmem:[#allocation2 + $0x30] sm:$0xff] 0.0
        %190 = vst [vmem:[#allocation2 + $0x38] sm:$0xff] 0.0
        %191 = vst [vmem:[#allocation2 + $0x40] sm:$0xff] 0.0
        %192 = vst [vmem:[#allocation2 + $0x48] sm:$0xff] 0.0
        %193 = vst [vmem:[#allocation2 + $0x50] sm:$0xff] 0.0
        %194 = vst [vmem:[#allocation2 + $0x58] sm:$0xff] 0.0
        %195 = vst [vmem:[#allocation2 + $0x60] sm:$0xff] 0.0
        %196 = vst [vmem:[#allocation2 + $0x68] sm:$0xff] 0.0
        %197 = vst [vmem:[#allocation2 + $0x70] sm:$0xff] 0.0
        %198 = vst [vmem:[#allocation2 + $0x78] sm:$0xff] 0.0
      $region32: #{_lambda_.3} parent=27 // pred_fallthru
        _
      %s199 = smul.u32 %s18, 256
      %s200 = sshra.s32 %s199, 3
      %s201 = sand.u32 %s199, 7
      %s202 = smul.addr %s200, 4
      %s203 = scalar_lea.vmem %s1, %s202
      %v204 = vld [vmem:[%s203] sm:$0xf]
      %v205 = vld [vmem:[%s203 + $0x4] sm:$0xf]
      %v206 = vld [vmem:[%s203 + $0x8] sm:$0xf]
      %v207 = vld [vmem:[%s203 + $0xc] sm:$0xf]
      %v208 = vld [vmem:[%s203 + $0x10] sm:$0xf]
      %v209 = vld [vmem:[%s203 + $0x14] sm:$0xf]
      %v210 = vld [vmem:[%s203 + $0x18] sm:$0xf]
      %v211 = vld [vmem:[%s203 + $0x1c] sm:$0xf]
      %v212 = vld [vmem:[%s203 + $0x20] sm:$0xf]
      %v213 = vld [vmem:[%s203 + $0x24] sm:$0xf]
      %v214 = vld [vmem:[%s203 + $0x28] sm:$0xf]
      %v215 = vld [vmem:[%s203 + $0x2c] sm:$0xf]
      %v216 = vld [vmem:[%s203 + $0x30] sm:$0xf]
      %v217 = vld [vmem:[%s203 + $0x34] sm:$0xf]
      %v218 = vld [vmem:[%s203 + $0x38] sm:$0xf]
      %v219 = vld [vmem:[%s203 + $0x3c] sm:$0xf]
      %v220 = vld [vmem:[%s203 + $0x40] sm:$0xf]
      %v221 = vld [vmem:[%s203 + $0x44] sm:$0xf]
      %v222 = vld [vmem:[%s203 + $0x48] sm:$0xf]
      %v223 = vld [vmem:[%s203 + $0x4c] sm:$0xf]
      %v224 = vld [vmem:[%s203 + $0x50] sm:$0xf]
      %v225 = vld [vmem:[%s203 + $0x54] sm:$0xf]
      %v226 = vld [vmem:[%s203 + $0x58] sm:$0xf]
      %v227 = vld [vmem:[%s203 + $0x5c] sm:$0xf]
      %v228 = vld [vmem:[%s203 + $0x60] sm:$0xf]
      %v229 = vld [vmem:[%s203 + $0x64] sm:$0xf]
      %v230 = vld [vmem:[%s203 + $0x68] sm:$0xf]
      %v231 = vld [vmem:[%s203 + $0x6c] sm:$0xf]
      %v232 = vld [vmem:[%s203 + $0x70] sm:$0xf]
      %v233 = vld [vmem:[%s203 + $0x74] sm:$0xf]
      %v234 = vld [vmem:[%s203 + $0x78] sm:$0xf]
      %v235 = vld [vmem:[%s203 + $0x7c] sm:$0xf]
      %v236 = vld [vmem:[#allocation2] sm:$0xff]
      %v237 = vld [vmem:[#allocation2 + $0x8] sm:$0xff]
      %v238 = vld [vmem:[#allocation2 + $0x10] sm:$0xff]
      %v239 = vld [vmem:[#allocation2 + $0x18] sm:$0xff]
      %v240 = vld [vmem:[#allocation2 + $0x20] sm:$0xff]
      %v241 = vld [vmem:[#allocation2 + $0x28] sm:$0xff]
      %v242 = vld [vmem:[#allocation2 + $0x30] sm:$0xff]
      %v243 = vld [vmem:[#allocation2 + $0x38] sm:$0xff]
      %v244 = vld [vmem:[#allocation2 + $0x40] sm:$0xff]
      %v245 = vld [vmem:[#allocation2 + $0x48] sm:$0xff]
      %v246 = vld [vmem:[#allocation2 + $0x50] sm:$0xff]
      %v247 = vld [vmem:[#allocation2 + $0x58] sm:$0xff]
      %v248 = vld [vmem:[#allocation2 + $0x60] sm:$0xff]
      %v249 = vld [vmem:[#allocation2 + $0x68] sm:$0xff]
      %v250 = vld [vmem:[#allocation2 + $0x70] sm:$0xff]
      %v251 = vld [vmem:[#allocation2 + $0x78] sm:$0xff]
      %v252 = vld [vmem:[%s169] sm:$0xff]
      %v253 = vld [vmem:[%s169 + $0x8] sm:$0xff]
      %v254 = vld [vmem:[%s169 + $0x10] sm:$0xff]
      %v255 = vld [vmem:[%s169 + $0x18] sm:$0xff]
      %v256 = vld [vmem:[%s169 + $0x20] sm:$0xff]
      %v257 = vld [vmem:[%s169 + $0x28] sm:$0xff]
      %v258 = vld [vmem:[%s169 + $0x30] sm:$0xff]
      %v259 = vld [vmem:[%s169 + $0x38] sm:$0xff]
      %v260 = vld [vmem:[%s169 + $0x40] sm:$0xff]
      %v261 = vld [vmem:[%s169 + $0x48] sm:$0xff]
      %v262 = vld [vmem:[%s169 + $0x50] sm:$0xff]
      %v263 = vld [vmem:[%s169 + $0x58] sm:$0xff]
      %v264 = vld [vmem:[%s169 + $0x60] sm:$0xff]
      %v265 = vld [vmem:[%s169 + $0x68] sm:$0xff]
      %v266 = vld [vmem:[%s169 + $0x70] sm:$0xff]
      %v267 = vld [vmem:[%s169 + $0x78] sm:$0xff]
      %v284 = vunpack.c.l.b16 %v252
      %v285 = vunpack.c.h.b16 %v252
      %v286 = vunpack.c.l.b16 %v253
      %v287 = vunpack.c.h.b16 %v253
      %v288 = vunpack.c.l.b16 %v254
      %v289 = vunpack.c.h.b16 %v254
      %v290 = vunpack.c.l.b16 %v255
      %v291 = vunpack.c.h.b16 %v255
      %v292 = vunpack.c.l.b16 %v256
      %v293 = vunpack.c.h.b16 %v256
      %v294 = vunpack.c.l.b16 %v257
      %v295 = vunpack.c.h.b16 %v257
      %v296 = vunpack.c.l.b16 %v258
      %v297 = vunpack.c.h.b16 %v258
      %v298 = vunpack.c.l.b16 %v259
      %v299 = vunpack.c.h.b16 %v259
      %v300 = vunpack.c.l.b16 %v260
      %v301 = vunpack.c.h.b16 %v260
      %v302 = vunpack.c.l.b16 %v261
      %v303 = vunpack.c.h.b16 %v261
      %v304 = vunpack.c.l.b16 %v262
      %v305 = vunpack.c.h.b16 %v262
      %v306 = vunpack.c.l.b16 %v263
      %v307 = vunpack.c.h.b16 %v263
      %v308 = vunpack.c.l.b16 %v264
      %v309 = vunpack.c.h.b16 %v264
      %v310 = vunpack.c.l.b16 %v265
      %v311 = vunpack.c.h.b16 %v265
      %v312 = vunpack.c.l.b16 %v266
      %v313 = vunpack.c.h.b16 %v266
      %v314 = vunpack.c.l.b16 %v267
      %v315 = vunpack.c.h.b16 %v267
      %v316 = vpack.c.b16 %v286, %v284
      %v317 = vpack.c.b16 %v287, %v285
      %v318 = vpack.c.b16 %v290, %v288
      %v319 = vpack.c.b16 %v291, %v289
      %v320 = vpack.c.b16 %v294, %v292
      %v321 = vpack.c.b16 %v295, %v293
      %v322 = vpack.c.b16 %v298, %v296
      %v323 = vpack.c.b16 %v299, %v297
      %v324 = vpack.c.b16 %v302, %v300
      %v325 = vpack.c.b16 %v303, %v301
      %v326 = vpack.c.b16 %v306, %v304
      %v327 = vpack.c.b16 %v307, %v305
      %v328 = vpack.c.b16 %v310, %v308
      %v329 = vpack.c.b16 %v311, %v309
      %v330 = vpack.c.b16 %v314, %v312
      %v331 = vpack.c.b16 %v315, %v313
      %v380 = vunpack.c.l.b16 %v204
      %v381 = vunpack.c.l.b16 %v205
      %v382 = vunpack.c.l.b16 %v206
      %v383 = vunpack.c.l.b16 %v207
      %v384 = vunpack.c.l.b16 %v208
      %v385 = vunpack.c.l.b16 %v209
      %v386 = vunpack.c.l.b16 %v210
      %v387 = vunpack.c.l.b16 %v211
      %v388 = vunpack.c.l.b16 %v212
      %v389 = vunpack.c.l.b16 %v213
      %v390 = vunpack.c.l.b16 %v214
      %v391 = vunpack.c.l.b16 %v215
      %v392 = vunpack.c.l.b16 %v216
      %v393 = vunpack.c.l.b16 %v217
      %v394 = vunpack.c.l.b16 %v218
      %v395 = vunpack.c.l.b16 %v219
      %v396 = vunpack.c.l.b16 %v220
      %v397 = vunpack.c.l.b16 %v221
      %v398 = vunpack.c.l.b16 %v222
      %v399 = vunpack.c.l.b16 %v223
      %v400 = vunpack.c.l.b16 %v224
      %v401 = vunpack.c.l.b16 %v225
      %v402 = vunpack.c.l.b16 %v226
      %v403 = vunpack.c.l.b16 %v227
      %v404 = vunpack.c.l.b16 %v228
      %v405 = vunpack.c.l.b16 %v229
      %v406 = vunpack.c.l.b16 %v230
      %v407 = vunpack.c.l.b16 %v231
      %v408 = vunpack.c.l.b16 %v232
      %v409 = vunpack.c.l.b16 %v233
      %v410 = vunpack.c.l.b16 %v234
      %v411 = vunpack.c.l.b16 %v235
      %v412 = vpack.c.b16 %v381, %v380
      %v413 = vpack.c.b16 %v383, %v382
      %v414 = vpack.c.b16 %v385, %v384
      %v415 = vpack.c.b16 %v387, %v386
      %v416 = vpack.c.b16 %v389, %v388
      %v417 = vpack.c.b16 %v391, %v390
      %v418 = vpack.c.b16 %v393, %v392
      %v419 = vpack.c.b16 %v395, %v394
      %v420 = vpack.c.b16 %v397, %v396
      %v421 = vpack.c.b16 %v399, %v398
      %v422 = vpack.c.b16 %v401, %v400
      %v423 = vpack.c.b16 %v403, %v402
      %v424 = vpack.c.b16 %v405, %v404
      %v425 = vpack.c.b16 %v407, %v406
      %v426 = vpack.c.b16 %v409, %v408
      %v427 = vpack.c.b16 %v411, %v410
      %444 = vmatprep.subr.bf16.mxu0 0
      %445 = vmatpush1.bf16.msra.mxu0 %v419
      %446 = vmatprep.subr.bf16.mxu0 0
      %447 = vmatpush1.bf16.msra.mxu0 %v418
      %448 = vmatprep.subr.bf16.mxu0 0
      %449 = vmatpush1.bf16.msra.mxu0 %v417
      %450 = vmatprep.subr.bf16.mxu0 0
      %451 = vmatpush1.bf16.msra.mxu0 %v416
      %452 = vmatprep.subr.bf16.mxu0 0
      %453 = vmatpush1.bf16.msra.mxu0 %v415
      %454 = vmatprep.subr.bf16.mxu0 0
      %455 = vmatpush1.bf16.msra.mxu0 %v414
      %456 = vmatprep.subr.bf16.mxu0 0
      %457 = vmatpush1.bf16.msra.mxu0 %v413
      %458 = vmatprep.subr.bf16.mxu0 0
      %459 = vmatpush1.bf16.msra.mxu0 %v412
      %460 = vmatprep.subr.bf16.mxu0 0
      %461 = vmatpush2.bf16.msra.mxu0 %v427
      %462 = vmatprep.subr.bf16.mxu0 0
      %463 = vmatpush2.bf16.msra.mxu0 %v426
      %464 = vmatprep.subr.bf16.mxu0 0
      %465 = vmatpush2.bf16.msra.mxu0 %v425
      %466 = vmatprep.subr.bf16.mxu0 0
      %467 = vmatpush2.bf16.msra.mxu0 %v424
      %468 = vmatprep.subr.bf16.mxu0 0
      %469 = vmatpush2.bf16.msra.mxu0 %v423
      %470 = vmatprep.subr.bf16.mxu0 0
      %471 = vmatpush2.bf16.msra.mxu0 %v422
      %472 = vmatprep.subr.bf16.mxu0 0
      %473 = vmatpush2.bf16.msra.mxu0 %v421
      %474 = vmatprep.subr.bf16.mxu0 0
      %475 = vmatpush2.bf16.msra.mxu0 %v420
      %476 = vmatprep.mubr.bf16.mxu0 %v317
      %477 = vmatmul.mubr.bf16.gmra.mxu0 %v316
      %v478 = vpop.f32.mrf.mxu0
      %v479 = vadd.f32 0.0, %v478
      %v480 = vpop.f32.mrf.mxu0
      %v481 = vpop.f32.mrf.mxu0
      %v482 = vadd.f32 0.0, %v481
      %v483 = vpop.f32.mrf.mxu0
      %484 = vmatprep.mubr.bf16.mxu0 %v319
      %485 = vmatmul.mubr.bf16.gmra.mxu0 %v318
      %v486 = vpop.f32.mrf.mxu0
      %v487 = vadd.f32 0.0, %v486
      %v488 = vpop.f32.mrf.mxu0
      %v489 = vpop.f32.mrf.mxu0
      %v490 = vadd.f32 0.0, %v489
      %v491 = vpop.f32.mrf.mxu0
      %492 = vmatprep.mubr.bf16.mxu0 %v321
      %493 = vmatmul.mubr.bf16.gmra.mxu0 %v320
      %v494 = vpop.f32.mrf.mxu0
      %v495 = vadd.f32 0.0, %v494
      %v496 = vpop.f32.mrf.mxu0
      %v497 = vpop.f32.mrf.mxu0
      %v498 = vadd.f32 0.0, %v497
      %v499 = vpop.f32.mrf.mxu0
      %500 = vmatprep.mubr.bf16.mxu0 %v323
      %501 = vmatmul.mubr.bf16.gmra.mxu0 %v322
      %v502 = vpop.f32.mrf.mxu0
      %v503 = vadd.f32 0.0, %v502
      %v504 = vpop.f32.mrf.mxu0
      %v505 = vpop.f32.mrf.mxu0
      %v506 = vadd.f32 0.0, %v505
      %v507 = vpop.f32.mrf.mxu0
      %508 = vmatprep.mubr.bf16.mxu0 %v325
      %509 = vmatmul.mubr.bf16.gmra.mxu0 %v324
      %v510 = vpop.f32.mrf.mxu0
      %v511 = vadd.f32 0.0, %v510
      %v512 = vpop.f32.mrf.mxu0
      %v513 = vpop.f32.mrf.mxu0
      %v514 = vadd.f32 0.0, %v513
      %v515 = vpop.f32.mrf.mxu0
      %516 = vmatprep.mubr.bf16.mxu0 %v327
      %517 = vmatmul.mubr.bf16.gmra.mxu0 %v326
      %v518 = vpop.f32.mrf.mxu0
      %v519 = vadd.f32 0.0, %v518
      %v520 = vpop.f32.mrf.mxu0
      %v521 = vpop.f32.mrf.mxu0
      %v522 = vadd.f32 0.0, %v521
      %v523 = vpop.f32.mrf.mxu0
      %524 = vmatprep.mubr.bf16.mxu0 %v329
      %525 = vmatmul.mubr.bf16.gmra.mxu0 %v328
      %v526 = vpop.f32.mrf.mxu0
      %v527 = vadd.f32 0.0, %v526
      %v528 = vpop.f32.mrf.mxu0
      %v529 = vpop.f32.mrf.mxu0
      %v530 = vadd.f32 0.0, %v529
      %v531 = vpop.f32.mrf.mxu0
      %532 = vmatprep.mubr.bf16.mxu0 %v331
      %533 = vmatmul.mubr.bf16.gmra.mxu0 %v330
      %v534 = vpop.f32.mrf.mxu0
      %v535 = vadd.f32 0.0, %v534
      %v536 = vpop.f32.mrf.mxu0
      %v537 = vpop.f32.mrf.mxu0
      %v538 = vadd.f32 0.0, %v537
      %v539 = vpop.f32.mrf.mxu0
      %540 = vdwg.mxu0
      %v541 = vadd.f32 %v236, %v479
      %v542 = vadd.f32 %v237, %v482
      %v543 = vadd.f32 %v238, %v487
      %v544 = vadd.f32 %v239, %v490
      %v545 = vadd.f32 %v240, %v495
      %v546 = vadd.f32 %v241, %v498
      %v547 = vadd.f32 %v242, %v503
      %v548 = vadd.f32 %v243, %v506
      %v549 = vadd.f32 %v244, %v511
      %v550 = vadd.f32 %v245, %v514
      %v551 = vadd.f32 %v246, %v519
      %v552 = vadd.f32 %v247, %v522
      %v553 = vadd.f32 %v248, %v527
      %v554 = vadd.f32 %v249, %v530
      %v555 = vadd.f32 %v250, %v535
      %v556 = vadd.f32 %v251, %v538
      %557 = vst [vmem:[#allocation2] sm:$0xff] %v541
      %558 = vst [vmem:[#allocation2 + $0x8] sm:$0xff] %v542
      %559 = vst [vmem:[#allocation2 + $0x10] sm:$0xff] %v543
      %560 = vst [vmem:[#allocation2 + $0x18] sm:$0xff] %v544
      %561 = vst [vmem:[#allocation2 + $0x20] sm:$0xff] %v545
      %562 = vst [vmem:[#allocation2 + $0x28] sm:$0xff] %v546
      %563 = vst [vmem:[#allocation2 + $0x30] sm:$0xff] %v547
      %564 = vst [vmem:[#allocation2 + $0x38] sm:$0xff] %v548
      %565 = vst [vmem:[#allocation2 + $0x40] sm:$0xff] %v549
      %566 = vst [vmem:[#allocation2 + $0x48] sm:$0xff] %v550
      %567 = vst [vmem:[#allocation2 + $0x50] sm:$0xff] %v551
      %568 = vst [vmem:[#allocation2 + $0x58] sm:$0xff] %v552
      %569 = vst [vmem:[#allocation2 + $0x60] sm:$0xff] %v553
      %570 = vst [vmem:[#allocation2 + $0x68] sm:$0xff] %v554
      %571 = vst [vmem:[#allocation2 + $0x70] sm:$0xff] %v555
      %572 = vst [vmem:[#allocation2 + $0x78] sm:$0xff] %v556
      // Predicated region
      $region33: #{_lambda_.3} parent=27 // pred_check
        %p573 = pneg %p179
      $region34: #{_lambda_.3} parent=27 // pred_check_branch
        %575 = sbr.rel (%p573) target = $region36
      $region35: #{_lambda_.3} parent=27 // pred_region
        %v576 = vld [vmem:[#allocation2] sm:$0xff]
        %v577 = vld [vmem:[#allocation2 + $0x8] sm:$0xff]
        %v578 = vld [vmem:[#allocation2 + $0x10] sm:$0xff]
        %v579 = vld [vmem:[#allocation2 + $0x18] sm:$0xff]
        %v580 = vld [vmem:[#allocation2 + $0x20] sm:$0xff]
        %v581 = vld [vmem:[#allocation2 + $0x28] sm:$0xff]
        %v582 = vld [vmem:[#allocation2 + $0x30] sm:$0xff]
        %v583 = vld [vmem:[#allocation2 + $0x38] sm:$0xff]
        %v584 = vld [vmem:[#allocation2 + $0x40] sm:$0xff]
        %v585 = vld [vmem:[#allocation2 + $0x48] sm:$0xff]
        %v586 = vld [vmem:[#allocation2 + $0x50] sm:$0xff]
        %v587 = vld [vmem:[#allocation2 + $0x58] sm:$0xff]
        %v588 = vld [vmem:[#allocation2 + $0x60] sm:$0xff]
        %v589 = vld [vmem:[#allocation2 + $0x68] sm:$0xff]
        %v590 = vld [vmem:[#allocation2 + $0x70] sm:$0xff]
        %v591 = vld [vmem:[#allocation2 + $0x78] sm:$0xff]
        %592 = vst [vmem:[%s176] sm:$0xff] %v576
        %593 = vst [vmem:[%s176 + $0x8] sm:$0xff] %v577
        %594 = vst [vmem:[%s176 + $0x10] sm:$0xff] %v578
        %595 = vst [vmem:[%s176 + $0x18] sm:$0xff] %v579
        %596 = vst [vmem:[%s176 + $0x20] sm:$0xff] %v580
        %597 = vst [vmem:[%s176 + $0x28] sm:$0xff] %v581
        %598 = vst [vmem:[%s176 + $0x30] sm:$0xff] %v582
        %599 = vst [vmem:[%s176 + $0x38] sm:$0xff] %v583
        %600 = vst [vmem:[%s176 + $0x40] sm:$0xff] %v584
        %601 = vst [vmem:[%s176 + $0x48] sm:$0xff] %v585
        %602 = vst [vmem:[%s176 + $0x50] sm:$0xff] %v586
        %603 = vst [vmem:[%s176 + $0x58] sm:$0xff] %v587
        %604 = vst [vmem:[%s176 + $0x60] sm:$0xff] %v588
        %605 = vst [vmem:[%s176 + $0x68] sm:$0xff] %v589
        %606 = vst [vmem:[%s176 + $0x70] sm:$0xff] %v590
        %607 = vst [vmem:[%s176 + $0x78] sm:$0xff] %v591
      $region36: #{_lambda_.3} parent=27 // pred_fallthru
        _
      %s608 = smul.u32 16, %s17
      %p609 = scmp.lt.s32.totalorder %s608, 31
      %s610 = scalar_select %p609, %s608, 31
      %s611 = smul.addr %s610, 8
      %s612 = scalar_lea.vmem %s2, %s611
      // Predicated region
      $region37: #{_lambda_.3} parent=27 // pred_check
        %p613 = pneg %p92
      $region38: #{_lambda_.3} parent=27 // pred_check_branch
        %615 = sbr.rel (%p613) target = $region40
      $region39: #{_lambda_.3} parent=27 // pred_region
        %s616 = smul.u32 16, %s17
      $region40: #{_lambda_.3} parent=27 // pred_fallthru
        _
    $region28: #{_lambda_.3} parent=5 // pred_fallthru
      _
    %p617 = scmp.le.s32.totalorder 2, %s8
    // Predicated region
    $region41: #{_lambda_.3} parent=5 // pred_check
      %p618 = pneg %p617
    $region42: #{_lambda_.3} parent=5 // pred_check_branch
      %620 = sbr.rel (%p618) target = $region44
    $region43: #{_lambda_.3} parent=5 // pred_region
      %s621 = ssub.s32 %s8, 2
      // Predicated region
      $region45: #{_lambda_.3} parent=43 // pred_check
        %p622 = pneg %p98
      $region46: #{_lambda_.3} parent=43 // pred_check_branch
        %624 = sbr.rel (%p622) target = $region48
      $region47: #{_lambda_.3} parent=43 // pred_region
        %s625 = smul.u32 16, %s19
        %p626 = scmp.lt.s32.totalorder %s625, 31
        %s627 = scalar_select %p626, %s625, 31
        %s628 = smul.addr %s627, 8
        %s629 = scalar_lea.vmem %s2, %s628
      $region48: #{_lambda_.3} parent=43 // pred_fallthru
        _
    $region44: #{_lambda_.3} parent=5 // pred_fallthru
      _
  $region6: #{_lambda_.3} parent=0 // loop_footer
    %s12 = sadd.s32 1, %s8
  $region7: #{_lambda_.3} parent=0 // loop_footer_branch
    %7 = sbr.rel target = $region3
  $region8: #{_lambda_.3} parent=0 // loop_exit
    _

// kernel: _lambda_.2
$region0: #{_lambda_.2}
  #allocation0 [shape = 'u32[]', space=smem, size = 0x4, offset = 0x4, fixed_abs, tag = 'smem constant byte address 0x4 - core index']
  #allocation1 [shape = 'u32[144,128]{1,0:T(1,128)}', space=vmem, size = 0x12000, scoped, tag = 'internal scratch']
  #allocation2 [shape = 'f32[128,128]{1,0:T(8,128)}', space=vmem, size = 0x10000, scoped, tag = 'scratch operand']
  %s0 = inlined_call_operand.vmem [shape: bf16[256,256], index: 0, kind: input, shape index: {}]
  %s1 = inlined_call_operand.vmem [shape: bf16[256,128], index: 1, kind: input, shape index: {}]
  %s2 = inlined_call_operand.vmem [shape: bf16[256,128], index: 2, kind: output, shape index: {}]
  %s3 = sld [smem:[#allocation0]]
  $region49: #{_lambda_.2} parent=0
    _
  %s5 = ssub.s32 1, %s3
  %s6 = scalar_select 0, %s5, %s3
  loop: start=0, step=1, limit=4
  $region2: #{_lambda_.2} parent=0 // loop_pre_header
    _
  $region3: #{_lambda_.2} parent=0 // loop_header
    %s8 = sphi 0, %s12
    %p9 = scmp.ge.s32.totalorder %s8, 4
    %s15 = sphi 0, %s27
    %s16 = sphi 0, %s23
    %s17 = sphi 0, %s15
    %s18 = sphi 0, %s16
    %s19 = sphi 0, %s17
    %s20 = sphi 0, %s18
    %s32 = sphi 0, %s34
    %s35 = sphi 0, %s32
    %s36 = sphi 0, %s35
    %s52 = sphi 0, %s36
    %s56 = sphi 0, %s56
    %s58 = sphi 0, %s56
    %s59 = sphi 0, %s58
    %s73 = sphi 0, %s59
    %s79 = sphi 0, %s81
    %s82 = sphi 0, %s79
    %s83 = sphi 0, %s82
    %s99 = sphi 0, %s83
  $region4: #{_lambda_.2} parent=0 // loop_header_branch
    %11 = sbr.rel (%p9) target = $region8
  $region5: #{_lambda_.2} parent=0 // loop_body
    %s13 = ssub.s32 %s8, 1
    %s14 = ssub.s32 %s8, 2
    %s21 = sadd.s32 1, %s16
    %p22 = scmp.ge.s32.totalorder %s21, 1
    %s23 = scalar_select %p22, 0, %s21
    %s24 = sadd.s32 1, %s15
    %s25 = scalar_select %p22, %s24, %s15
    %p26 = scmp.ge.s32.totalorder %s25, 2
    %s27 = scalar_select %p26, 0, %s25
    %s28 = ssub.s32 %s15, %s27
    %s29 = ssub.s32 %s16, %s23
    %s30 = sor.u32 %s28, %s29
    %p31 = scmp.eq.s32.totalorder %s30, 0
    %s33 = sadd.s32 %s32, 1
    %s34 = scalar_select %p31, %s32, %s33
    %p37 = pneg %p31
    %p38 = scmp.eq.s32.totalorder %s8, 1
    %p39 = por %p37, %p38
    %p40 = scmp.ne.s32.totalorder %s32, %s35
    %p41 = scmp.eq.s32.totalorder %s8, 0
    %p42 = por %p40, %p41
    %p43 = scmp.ne.s32.totalorder %s32, %s35
    %p44 = scmp.eq.s32.totalorder %s13, 1
    %p45 = por %p43, %p44
    %p46 = scmp.ne.s32.totalorder %s35, %s36
    %p47 = scmp.eq.s32.totalorder %s13, 0
    %p48 = por %p46, %p47
    %p49 = scmp.ne.s32.totalorder %s35, %s36
    %p50 = scmp.eq.s32.totalorder %s14, 1
    %p51 = por %p49, %p50
    %p53 = scmp.ne.s32.totalorder %s36, %s52
    %p54 = scmp.eq.s32.totalorder %s14, 0
    %p55 = por %p53, %p54
    %s57 = sadd.s32 %s56, 1
    %p60 = scmp.eq.s32.totalorder %s8, 1
    %p61 = scmp.ne.s32.totalorder %s56, %s58
    %p62 = scmp.eq.s32.totalorder %s8, 0
    %p63 = por %p61, %p62
    %p64 = scmp.ne.s32.totalorder %s56, %s58
    %p65 = scmp.eq.s32.totalorder %s13, 1
    %p66 = por %p64, %p65
    %p67 = scmp.ne.s32.totalorder %s58, %s59
    %p68 = scmp.eq.s32.totalorder %s13, 0
    %p69 = por %p67, %p68
    %p70 = scmp.ne.s32.totalorder %s58, %s59
    %p71 = scmp.eq.s32.totalorder %s14, 1
    %p72 = por %p70, %p71
    %p74 = scmp.ne.s32.totalorder %s59, %s73
    %p75 = scmp.eq.s32.totalorder %s14, 0
    %p76 = por %p74, %p75
    %s77 = ssub.s32 %s15, %s27
    %p78 = scmp.eq.s32.totalorder %s77, 0
    %s80 = sadd.s32 %s79, 1
    %s81 = scalar_select %p78, %s79, %s80
    %p84 = pneg %p78
    %p85 = scmp.eq.s32.totalorder %s8, 1
    %p86 = por %p84, %p85
    %p87 = scmp.ne.s32.totalorder %s79, %s82
    %p88 = scmp.eq.s32.totalorder %s8, 0
    %p89 = por %p87, %p88
    %p90 = scmp.ne.s32.totalorder %s79, %s82
    %p91 = scmp.eq.s32.totalorder %s13, 1
    %p92 = por %p90, %p91
    %p93 = scmp.ne.s32.totalorder %s82, %s83
    %p94 = scmp.eq.s32.totalorder %s13, 0
    %p95 = por %p93, %p94
    %p96 = scmp.ne.s32.totalorder %s82, %s83
    %p97 = scmp.eq.s32.totalorder %s14, 1
    %p98 = por %p96, %p97
    %p100 = scmp.ne.s32.totalorder %s83, %s99
    %p101 = scmp.eq.s32.totalorder %s14, 0
    %p102 = por %p100, %p101
    %p103 = scmp.le.s32.totalorder 1, %s8
    %p104 = scmp.lt.s32.totalorder %s8, 3
    %p105 = pnand %p103, %p104
    %p106 = pneg %p105
    // Predicated region
    $region9: #{_lambda_.2} parent=5 // pred_check
      _
    $region10: #{_lambda_.2} parent=5 // pred_check_branch
      %108 = sbr.rel (%p105) target = $region12
    $region11: #{_lambda_.2} parent=5 // pred_region
      %s109 = ssub.s32 %s8, 1
      // Predicated region
      $region13: #{_lambda_.2} parent=11 // pred_check
        %p110 = pneg %p69
      $region14: #{_lambda_.2} parent=11 // pred_check_branch
        %112 = sbr.rel (%p110) target = $region16
      $region15: #{_lambda_.2} parent=11 // pred_region
        _
      $region16: #{_lambda_.2} parent=11 // pred_fallthru
        _
    $region12: #{_lambda_.2} parent=5 // pred_fallthru
      _
    %p113 = scmp.lt.s32.totalorder %s8, 2
    // Predicated region
    $region17: #{_lambda_.2} parent=5 // pred_check
      %p114 = pneg %p113
    $region18: #{_lambda_.2} parent=5 // pred_check_branch
      %116 = sbr.rel (%p114) target = $region20
    $region19: #{_lambda_.2} parent=5 // pred_region
      // Predicated region
      $region21: #{_lambda_.2} parent=19 // pred_check
        %p117 = pneg %p42
      $region22: #{_lambda_.2} parent=19 // pred_check_branch
        %119 = sbr.rel (%p117) target = $region24
      $region23: #{_lambda_.2} parent=19 // pred_region
        %s120 = smul.u32 16, %s15
        %s121 = smul.u32 2, %s16
        %p122 = scmp.lt.s32.totalorder %s120, 31
        %s123 = scalar_select %p122, %s120, 31
        %p124 = scmp.lt.s32.totalorder %s121, 1
        %s125 = scalar_select %p124, %s121, 1
        %s126 = smul.addr %s123, 2
        %s127 = sadd.s32 %s125, %s126
        %s128 = smul.addr %s127, 4
        %s129 = scalar_lea.vmem %s0, %s128
        %s130 = smul.u32 16, %s15
        %s131 = smul.u32 2, %s16
      $region24: #{_lambda_.2} parent=19 // pred_fallthru
        _
    $region20: #{_lambda_.2} parent=5 // pred_fallthru
      _
    %p132 = scmp.le.s32.totalorder 1, %s8
    %p133 = scmp.lt.s32.totalorder %s8, 3
    %p134 = pnand %p132, %p133
    %p135 = pneg %p134
    // Predicated region
    $region25: #{_lambda_.2} parent=5 // pred_check
      _
    $region26: #{_lambda_.2} parent=5 // pred_check_branch
      %137 = sbr.rel (%p134) target = $region28
    $region27: #{_lambda_.2} parent=5 // pred_region
      %s138 = ssub.s32 %s8, 1
      %s139 = smul.u32 16, %s17
      %s140 = smul.u32 2, %s18
      %p141 = scmp.lt.s32.totalorder %s139, 31
      %s142 = scalar_select %p141, %s139, 31
      %p143 = scmp.lt.s32.totalorder %s140, 1
      %s144 = scalar_select %p143, %s140, 1
      %s145 = smul.addr %s142, 2
      %s146 = sadd.s32 %s144, %s145
      %s147 = smul.addr %s146, 4
      %s148 = scalar_lea.vmem %s0, %s147
      %p149 = pneg %p48
      %p150 = pneg %p45
      %p151 = pneg %p69
      %p152 = pneg %p66
      %p153 = pneg %p95
      %p154 = pneg %p92
      %s155 = smul.u32 16, %s17
      %p156 = scmp.lt.s32.totalorder %s155, 31
      %s157 = scalar_select %p156, %s155, 31
      %s158 = smul.addr %s157, 4
      %s159 = scalar_lea.vmem %s2, %s158
      %s160 = smul.u32 16, %s17
      %s161 = smul.u32 2, %s18
      %p162 = scmp.lt.s32.totalorder %s160, 31
      %s163 = scalar_select %p162, %s160, 31
      %p164 = scmp.lt.s32.totalorder %s161, 1
      %s165 = scalar_select %p164, %s161, 1
      %s166 = smul.addr %s163, 2
      %s167 = sadd.s32 %s165, %s166
      %s168 = smul.addr %s167, 4
      %s169 = scalar_lea.vmem %s0, %s168
      %s170 = smul.u32 16, %s17
      %s171 = smul.u32 2, %s18
      %s172 = smul.u32 16, %s17
      %p173 = scmp.lt.s32.totalorder %s172, 31
      %s174 = scalar_select %p173, %s172, 31
      %s175 = smul.addr %s174, 4
      %s176 = scalar_lea.vmem %s2, %s175
      %s177 = smul.u32 16, %s17
      %p179 = scmp.eq.s32.totalorder %s18, 0
      // Predicated region
      $region29: #{_lambda_.2} parent=27 // pred_check
        %p180 = pneg %p179
      $region30: #{_lambda_.2} parent=27 // pred_check_branch
        %182 = sbr.rel (%p180) target = $region32
      $region31: #{_lambda_.2} parent=27 // pred_region
        %183 = vst [vmem:[#allocation2] sm:$0xff] 0.0
        %184 = vst [vmem:[#allocation2 + $0x8] sm:$0xff] 0.0
        %185 = vst [vmem:[#allocation2 + $0x10] sm:$0xff] 0.0
        %186 = vst [vmem:[#allocation2 + $0x18] sm:$0xff] 0.0
        %187 = vst [vmem:[#allocation2 + $0x20] sm:$0xff] 0.0
        %188 = vst [vmem:[#allocation2 + $0x28] sm:$0xff] 0.0
        %189 = vst [vmem:[#allocation2 + $0x30] sm:$0xff] 0.0
        %190 = vst [vmem:[#allocation2 + $0x38] sm:$0xff] 0.0
        %191 = vst [vmem:[#allocation2 + $0x40] sm:$0xff] 0.0
        %192 = vst [vmem:[#allocation2 + $0x48] sm:$0xff] 0.0
        %193 = vst [vmem:[#allocation2 + $0x50] sm:$0xff] 0.0
        %194 = vst [vmem:[#allocation2 + $0x58] sm:$0xff] 0.0
        %195 = vst [vmem:[#allocation2 + $0x60] sm:$0xff] 0.0
        %196 = vst [vmem:[#allocation2 + $0x68] sm:$0xff] 0.0
        %197 = vst [vmem:[#allocation2 + $0x70] sm:$0xff] 0.0
        %198 = vst [vmem:[#allocation2 + $0x78] sm:$0xff] 0.0
      $region32: #{_lambda_.2} parent=27 // pred_fallthru
        _
      %s199 = smul.u32 %s18, 256
      %s200 = sshra.s32 %s199, 3
      %s201 = sand.u32 %s199, 7
      %s202 = smul.addr %s200, 4
      %s203 = scalar_lea.vmem %s1, %s202
      %v204 = vld [vmem:[%s203] sm:$0xf]
      %v205 = vld [vmem:[%s203 + $0x4] sm:$0xf]
      %v206 = vld [vmem:[%s203 + $0x8] sm:$0xf]
      %v207 = vld [vmem:[%s203 + $0xc] sm:$0xf]
      %v208 = vld [vmem:[%s203 + $0x10] sm:$0xf]
      %v209 = vld [vmem:[%s203 + $0x14] sm:$0xf]
      %v210 = vld [vmem:[%s203 + $0x18] sm:$0xf]
      %v211 = vld [vmem:[%s203 + $0x1c] sm:$0xf]
      %v212 = vld [vmem:[%s203 + $0x20] sm:$0xf]
      %v213 = vld [vmem:[%s203 + $0x24] sm:$0xf]
      %v214 = vld [vmem:[%s203 + $0x28] sm:$0xf]
      %v215 = vld [vmem:[%s203 + $0x2c] sm:$0xf]
      %v216 = vld [vmem:[%s203 + $0x30] sm:$0xf]
      %v217 = vld [vmem:[%s203 + $0x34] sm:$0xf]
      %v218 = vld [vmem:[%s203 + $0x38] sm:$0xf]
      %v219 = vld [vmem:[%s203 + $0x3c] sm:$0xf]
      %v220 = vld [vmem:[%s203 + $0x40] sm:$0xf]
      %v221 = vld [vmem:[%s203 + $0x44] sm:$0xf]
      %v222 = vld [vmem:[%s203 + $0x48] sm:$0xf]
      %v223 = vld [vmem:[%s203 + $0x4c] sm:$0xf]
      %v224 = vld [vmem:[%s203 + $0x50] sm:$0xf]
      %v225 = vld [vmem:[%s203 + $0x54] sm:$0xf]
      %v226 = vld [vmem:[%s203 + $0x58] sm:$0xf]
      %v227 = vld [vmem:[%s203 + $0x5c] sm:$0xf]
      %v228 = vld [vmem:[%s203 + $0x60] sm:$0xf]
      %v229 = vld [vmem:[%s203 + $0x64] sm:$0xf]
      %v230 = vld [vmem:[%s203 + $0x68] sm:$0xf]
      %v231 = vld [vmem:[%s203 + $0x6c] sm:$0xf]
      %v232 = vld [vmem:[%s203 + $0x70] sm:$0xf]
      %v233 = vld [vmem:[%s203 + $0x74] sm:$0xf]
      %v234 = vld [vmem:[%s203 + $0x78] sm:$0xf]
      %v235 = vld [vmem:[%s203 + $0x7c] sm:$0xf]
      %v236 = vld [vmem:[#allocation2] sm:$0xff]
      %v237 = vld [vmem:[#allocation2 + $0x8] sm:$0xff]
      %v238 = vld [vmem:[#allocation2 + $0x10] sm:$0xff]
      %v239 = vld [vmem:[#allocation2 + $0x18] sm:$0xff]
      %v240 = vld [vmem:[#allocation2 + $0x20] sm:$0xff]
      %v241 = vld [vmem:[#allocation2 + $0x28] sm:$0xff]
      %v242 = vld [vmem:[#allocation2 + $0x30] sm:$0xff]
      %v243 = vld [vmem:[#allocation2 + $0x38] sm:$0xff]
      %v244 = vld [vmem:[#allocation2 + $0x40] sm:$0xff]
      %v245 = vld [vmem:[#allocation2 + $0x48] sm:$0xff]
      %v246 = vld [vmem:[#allocation2 + $0x50] sm:$0xff]
      %v247 = vld [vmem:[#allocation2 + $0x58] sm:$0xff]
      %v248 = vld [vmem:[#allocation2 + $0x60] sm:$0xff]
      %v249 = vld [vmem:[#allocation2 + $0x68] sm:$0xff]
      %v250 = vld [vmem:[#allocation2 + $0x70] sm:$0xff]
      %v251 = vld [vmem:[#allocation2 + $0x78] sm:$0xff]
      %v252 = vld [vmem:[%s169] sm:$0xff]
      %v253 = vld [vmem:[%s169 + $0x8] sm:$0xff]
      %v254 = vld [vmem:[%s169 + $0x10] sm:$0xff]
      %v255 = vld [vmem:[%s169 + $0x18] sm:$0xff]
      %v256 = vld [vmem:[%s169 + $0x20] sm:$0xff]
      %v257 = vld [vmem:[%s169 + $0x28] sm:$0xff]
      %v258 = vld [vmem:[%s169 + $0x30] sm:$0xff]
      %v259 = vld [vmem:[%s169 + $0x38] sm:$0xff]
      %v260 = vld [vmem:[%s169 + $0x40] sm:$0xff]
      %v261 = vld [vmem:[%s169 + $0x48] sm:$0xff]
      %v262 = vld [vmem:[%s169 + $0x50] sm:$0xff]
      %v263 = vld [vmem:[%s169 + $0x58] sm:$0xff]
      %v264 = vld [vmem:[%s169 + $0x60] sm:$0xff]
      %v265 = vld [vmem:[%s169 + $0x68] sm:$0xff]
      %v266 = vld [vmem:[%s169 + $0x70] sm:$0xff]
      %v267 = vld [vmem:[%s169 + $0x78] sm:$0xff]
      %v284 = vunpack.c.l.b16 %v252
      %v285 = vunpack.c.h.b16 %v252
      %v286 = vunpack.c.l.b16 %v253
      %v287 = vunpack.c.h.b16 %v253
      %v288 = vunpack.c.l.b16 %v254
      %v289 = vunpack.c.h.b16 %v254
      %v290 = vunpack.c.l.b16 %v255
      %v291 = vunpack.c.h.b16 %v255
      %v292 = vunpack.c.l.b16 %v256
      %v293 = vunpack.c.h.b16 %v256
      %v294 = vunpack.c.l.b16 %v257
      %v295 = vunpack.c.h.b16 %v257
      %v296 = vunpack.c.l.b16 %v258
      %v297 = vunpack.c.h.b16 %v258
      %v298 = vunpack.c.l.b16 %v259
      %v299 = vunpack.c.h.b16 %v259
      %v300 = vunpack.c.l.b16 %v260
      %v301 = vunpack.c.h.b16 %v260
      %v302 = vunpack.c.l.b16 %v261
      %v303 = vunpack.c.h.b16 %v261
      %v304 = vunpack.c.l.b16 %v262
      %v305 = vunpack.c.h.b16 %v262
      %v306 = vunpack.c.l.b16 %v263
      %v307 = vunpack.c.h.b16 %v263
      %v308 = vunpack.c.l.b16 %v264
      %v309 = vunpack.c.h.b16 %v264
      %v310 = vunpack.c.l.b16 %v265
      %v311 = vunpack.c.h.b16 %v265
      %v312 = vunpack.c.l.b16 %v266
      %v313 = vunpack.c.h.b16 %v266
      %v314 = vunpack.c.l.b16 %v267
      %v315 = vunpack.c.h.b16 %v267
      %v316 = vpack.c.b16 %v286, %v284
      %v317 = vpack.c.b16 %v287, %v285
      %v318 = vpack.c.b16 %v290, %v288
      %v319 = vpack.c.b16 %v291, %v289
      %v320 = vpack.c.b16 %v294, %v292
      %v321 = vpack.c.b16 %v295, %v293
      %v322 = vpack.c.b16 %v298, %v296
      %v323 = vpack.c.b16 %v299, %v297
      %v324 = vpack.c.b16 %v302, %v300
      %v325 = vpack.c.b16 %v303, %v301
      %v326 = vpack.c.b16 %v306, %v304
      %v327 = vpack.c.b16 %v307, %v305
      %v328 = vpack.c.b16 %v310, %v308
      %v329 = vpack.c.b16 %v311, %v309
      %v330 = vpack.c.b16 %v314, %v312
      %v331 = vpack.c.b16 %v315, %v313
      %v380 = vunpack.c.l.b16 %v204
      %v381 = vunpack.c.l.b16 %v205
      %v382 = vunpack.c.l.b16 %v206
      %v383 = vunpack.c.l.b16 %v207
      %v384 = vunpack.c.l.b16 %v208
      %v385 = vunpack.c.l.b16 %v209
      %v386 = vunpack.c.l.b16 %v210
      %v387 = vunpack.c.l.b16 %v211
      %v388 = vunpack.c.l.b16 %v212
      %v389 = vunpack.c.l.b16 %v213
      %v390 = vunpack.c.l.b16 %v214
      %v391 = vunpack.c.l.b16 %v215
      %v392 = vunpack.c.l.b16 %v216
      %v393 = vunpack.c.l.b16 %v217
      %v394 = vunpack.c.l.b16 %v218
      %v395 = vunpack.c.l.b16 %v219
      %v396 = vunpack.c.l.b16 %v220
      %v397 = vunpack.c.l.b16 %v221
      %v398 = vunpack.c.l.b16 %v222
      %v399 = vunpack.c.l.b16 %v223
      %v400 = vunpack.c.l.b16 %v224
      %v401 = vunpack.c.l.b16 %v225
      %v402 = vunpack.c.l.b16 %v226
      %v403 = vunpack.c.l.b16 %v227
      %v404 = vunpack.c.l.b16 %v228
      %v405 = vunpack.c.l.b16 %v229
      %v406 = vunpack.c.l.b16 %v230
      %v407 = vunpack.c.l.b16 %v231
      %v408 = vunpack.c.l.b16 %v232
      %v409 = vunpack.c.l.b16 %v233
      %v410 = vunpack.c.l.b16 %v234
      %v411 = vunpack.c.l.b16 %v235
      %v412 = vpack.c.b16 %v381, %v380
      %v413 = vpack.c.b16 %v383, %v382
      %v414 = vpack.c.b16 %v385, %v384
      %v415 = vpack.c.b16 %v387, %v386
      %v416 = vpack.c.b16 %v389, %v388
      %v417 = vpack.c.b16 %v391, %v390
      %v418 = vpack.c.b16 %v393, %v392
      %v419 = vpack.c.b16 %v395, %v394
      %v420 = vpack.c.b16 %v397, %v396
      %v421 = vpack.c.b16 %v399, %v398
      %v422 = vpack.c.b16 %v401, %v400
      %v423 = vpack.c.b16 %v403, %v402
      %v424 = vpack.c.b16 %v405, %v404
      %v425 = vpack.c.b16 %v407, %v406
      %v426 = vpack.c.b16 %v409, %v408
      %v427 = vpack.c.b16 %v411, %v410
      %444 = vmatprep.subr.bf16.mxu0 0
      %445 = vmatpush1.bf16.msra.mxu0 %v419
      %446 = vmatprep.subr.bf16.mxu0 0
      %447 = vmatpush1.bf16.msra.mxu0 %v418
      %448 = vmatprep.subr.bf16.mxu0 0
      %449 = vmatpush1.bf16.msra.mxu0 %v417
      %450 = vmatprep.subr.bf16.mxu0 0
      %451 = vmatpush1.bf16.msra.mxu0 %v416
      %452 = vmatprep.subr.bf16.mxu0 0
      %453 = vmatpush1.bf16.msra.mxu0 %v415
      %454 = vmatprep.subr.bf16.mxu0 0
      %455 = vmatpush1.bf16.msra.mxu0 %v414
      %456 = vmatprep.subr.bf16.mxu0 0
      %457 = vmatpush1.bf16.msra.mxu0 %v413
      %458 = vmatprep.subr.bf16.mxu0 0
      %459 = vmatpush1.bf16.msra.mxu0 %v412
      %460 = vmatprep.subr.bf16.mxu0 0
      %461 = vmatpush2.bf16.msra.mxu0 %v427
      %462 = vmatprep.subr.bf16.mxu0 0
      %463 = vmatpush2.bf16.msra.mxu0 %v426
      %464 = vmatprep.subr.bf16.mxu0 0
      %465 = vmatpush2.bf16.msra.mxu0 %v425
      %466 = vmatprep.subr.bf16.mxu0 0
      %467 = vmatpush2.bf16.msra.mxu0 %v424
      %468 = vmatprep.subr.bf16.mxu0 0
      %469 = vmatpush2.bf16.msra.mxu0 %v423
      %470 = vmatprep.subr.bf16.mxu0 0
      %471 = vmatpush2.bf16.msra.mxu0 %v422
      %472 = vmatprep.subr.bf16.mxu0 0
      %473 = vmatpush2.bf16.msra.mxu0 %v421
      %474 = vmatprep.subr.bf16.mxu0 0
      %475 = vmatpush2.bf16.msra.mxu0 %v420
      %476 = vmatprep.mubr.bf16.mxu0 %v317
      %477 = vmatmul.mubr.bf16.gmra.mxu0 %v316
      %v478 = vpop.f32.mrf.mxu0
      %v479 = vadd.f32 0.0, %v478
      %v480 = vpop.f32.mrf.mxu0
      %v481 = vpop.f32.mrf.mxu0
      %v482 = vadd.f32 0.0, %v481
      %v483 = vpop.f32.mrf.mxu0
      %484 = vmatprep.mubr.bf16.mxu0 %v319
      %485 = vmatmul.mubr.bf16.gmra.mxu0 %v318
      %v486 = vpop.f32.mrf.mxu0
      %v487 = vadd.f32 0.0, %v486
      %v488 = vpop.f32.mrf.mxu0
      %v489 = vpop.f32.mrf.mxu0
      %v490 = vadd.f32 0.0, %v489
      %v491 = vpop.f32.mrf.mxu0
      %492 = vmatprep.mubr.bf16.mxu0 %v321
      %493 = vmatmul.mubr.bf16.gmra.mxu0 %v320
      %v494 = vpop.f32.mrf.mxu0
      %v495 = vadd.f32 0.0, %v494
      %v496 = vpop.f32.mrf.mxu0
      %v497 = vpop.f32.mrf.mxu0
      %v498 = vadd.f32 0.0, %v497
      %v499 = vpop.f32.mrf.mxu0
      %500 = vmatprep.mubr.bf16.mxu0 %v323
      %501 = vmatmul.mubr.bf16.gmra.mxu0 %v322
      %v502 = vpop.f32.mrf.mxu0
      %v503 = vadd.f32 0.0, %v502
      %v504 = vpop.f32.mrf.mxu0
      %v505 = vpop.f32.mrf.mxu0
      %v506 = vadd.f32 0.0, %v505
      %v507 = vpop.f32.mrf.mxu0
      %508 = vmatprep.mubr.bf16.mxu0 %v325
      %509 = vmatmul.mubr.bf16.gmra.mxu0 %v324
      %v510 = vpop.f32.mrf.mxu0
      %v511 = vadd.f32 0.0, %v510
      %v512 = vpop.f32.mrf.mxu0
      %v513 = vpop.f32.mrf.mxu0
      %v514 = vadd.f32 0.0, %v513
      %v515 = vpop.f32.mrf.mxu0
      %516 = vmatprep.mubr.bf16.mxu0 %v327
      %517 = vmatmul.mubr.bf16.gmra.mxu0 %v326
      %v518 = vpop.f32.mrf.mxu0
      %v519 = vadd.f32 0.0, %v518
      %v520 = vpop.f32.mrf.mxu0
      %v521 = vpop.f32.mrf.mxu0
      %v522 = vadd.f32 0.0, %v521
      %v523 = vpop.f32.mrf.mxu0
      %524 = vmatprep.mubr.bf16.mxu0 %v329
      %525 = vmatmul.mubr.bf16.gmra.mxu0 %v328
      %v526 = vpop.f32.mrf.mxu0
      %v527 = vadd.f32 0.0, %v526
      %v528 = vpop.f32.mrf.mxu0
      %v529 = vpop.f32.mrf.mxu0
      %v530 = vadd.f32 0.0, %v529
      %v531 = vpop.f32.mrf.mxu0
      %532 = vmatprep.mubr.bf16.mxu0 %v331
      %533 = vmatmul.mubr.bf16.gmra.mxu0 %v330
      %v534 = vpop.f32.mrf.mxu0
      %v535 = vadd.f32 0.0, %v534
      %v536 = vpop.f32.mrf.mxu0
      %v537 = vpop.f32.mrf.mxu0
      %v538 = vadd.f32 0.0, %v537
      %v539 = vpop.f32.mrf.mxu0
      %540 = vdwg.mxu0
      %v541 = vadd.f32 %v236, %v479
      %v542 = vadd.f32 %v237, %v482
      %v543 = vadd.f32 %v238, %v487
      %v544 = vadd.f32 %v239, %v490
      %v545 = vadd.f32 %v240, %v495
      %v546 = vadd.f32 %v241, %v498
      %v547 = vadd.f32 %v242, %v503
      %v548 = vadd.f32 %v243, %v506
      %v549 = vadd.f32 %v244, %v511
      %v550 = vadd.f32 %v245, %v514
      %v551 = vadd.f32 %v246, %v519
      %v552 = vadd.f32 %v247, %v522
      %v553 = vadd.f32 %v248, %v527
      %v554 = vadd.f32 %v249, %v530
      %v555 = vadd.f32 %v250, %v535
      %v556 = vadd.f32 %v251, %v538
      %557 = vst [vmem:[#allocation2] sm:$0xff] %v541
      %558 = vst [vmem:[#allocation2 + $0x8] sm:$0xff] %v542
      %559 = vst [vmem:[#allocation2 + $0x10] sm:$0xff] %v543
      %560 = vst [vmem:[#allocation2 + $0x18] sm:$0xff] %v544
      %561 = vst [vmem:[#allocation2 + $0x20] sm:$0xff] %v545
      %562 = vst [vmem:[#allocation2 + $0x28] sm:$0xff] %v546
      %563 = vst [vmem:[#allocation2 + $0x30] sm:$0xff] %v547
      %564 = vst [vmem:[#allocation2 + $0x38] sm:$0xff] %v548
      %565 = vst [vmem:[#allocation2 + $0x40] sm:$0xff] %v549
      %566 = vst [vmem:[#allocation2 + $0x48] sm:$0xff] %v550
      %567 = vst [vmem:[#allocation2 + $0x50] sm:$0xff] %v551
      %568 = vst [vmem:[#allocation2 + $0x58] sm:$0xff] %v552
      %569 = vst [vmem:[#allocation2 + $0x60] sm:$0xff] %v553
      %570 = vst [vmem:[#allocation2 + $0x68] sm:$0xff] %v554
      %571 = vst [vmem:[#allocation2 + $0x70] sm:$0xff] %v555
      %572 = vst [vmem:[#allocation2 + $0x78] sm:$0xff] %v556
      // Predicated region
      $region33: #{_lambda_.2} parent=27 // pred_check
        %p573 = pneg %p179
      $region34: #{_lambda_.2} parent=27 // pred_check_branch
        %575 = sbr.rel (%p573) target = $region36
      $region35: #{_lambda_.2} parent=27 // pred_region
        %v576 = vld [vmem:[#allocation2] sm:$0xff]
        %v577 = vld [vmem:[#allocation2 + $0x8] sm:$0xff]
        %v578 = vld [vmem:[#allocation2 + $0x10] sm:$0xff]
        %v579 = vld [vmem:[#allocation2 + $0x18] sm:$0xff]
        %v580 = vld [vmem:[#allocation2 + $0x20] sm:$0xff]
        %v581 = vld [vmem:[#allocation2 + $0x28] sm:$0xff]
        %v582 = vld [vmem:[#allocation2 + $0x30] sm:$0xff]
        %v583 = vld [vmem:[#allocation2 + $0x38] sm:$0xff]
        %v584 = vld [vmem:[#allocation2 + $0x40] sm:$0xff]
        %v585 = vld [vmem:[#allocation2 + $0x48] sm:$0xff]
        %v586 = vld [vmem:[#allocation2 + $0x50] sm:$0xff]
        %v587 = vld [vmem:[#allocation2 + $0x58] sm:$0xff]
        %v588 = vld [vmem:[#allocation2 + $0x60] sm:$0xff]
        %v589 = vld [vmem:[#allocation2 + $0x68] sm:$0xff]
        %v590 = vld [vmem:[#allocation2 + $0x70] sm:$0xff]
        %v591 = vld [vmem:[#allocation2 + $0x78] sm:$0xff]
        %v592 = vmax.f32 %v576, 0.0
        %v593 = vmax.f32 %v577, 0.0
        %v594 = vmax.f32 %v578, 0.0
        %v595 = vmax.f32 %v579, 0.0
        %v596 = vmax.f32 %v580, 0.0
        %v597 = vmax.f32 %v581, 0.0
        %v598 = vmax.f32 %v582, 0.0
        %v599 = vmax.f32 %v583, 0.0
        %v600 = vmax.f32 %v584, 0.0
        %v601 = vmax.f32 %v585, 0.0
        %v602 = vmax.f32 %v586, 0.0
        %v603 = vmax.f32 %v587, 0.0
        %v604 = vmax.f32 %v588, 0.0
        %v605 = vmax.f32 %v589, 0.0
        %v606 = vmax.f32 %v590, 0.0
        %v607 = vmax.f32 %v591, 0.0
        %v608 = vpack.c.bf16 %v593, %v592
        %v609 = vpack.c.bf16 %v595, %v594
        %v610 = vpack.c.bf16 %v597, %v596
        %v611 = vpack.c.bf16 %v599, %v598
        %v612 = vpack.c.bf16 %v601, %v600
        %v613 = vpack.c.bf16 %v603, %v602
        %v614 = vpack.c.bf16 %v605, %v604
        %v615 = vpack.c.bf16 %v607, %v606
        %v624 = vunpack.c.l.b16 %v608
        %v625 = vunpack.c.h.b16 %v608
        %v626 = vunpack.c.l.b16 %v609
        %v627 = vunpack.c.h.b16 %v609
        %v628 = vunpack.c.l.b16 %v610
        %v629 = vunpack.c.h.b16 %v610
        %v630 = vunpack.c.l.b16 %v611
        %v631 = vunpack.c.h.b16 %v611
        %v632 = vunpack.c.l.b16 %v612
        %v633 = vunpack.c.h.b16 %v612
        %v634 = vunpack.c.l.b16 %v613
        %v635 = vunpack.c.h.b16 %v613
        %v636 = vunpack.c.l.b16 %v614
        %v637 = vunpack.c.h.b16 %v614
        %v638 = vunpack.c.l.b16 %v615
        %v639 = vunpack.c.h.b16 %v615
        %v640 = vpack.c.b16 %v624, %v624
        %v641 = vpack.c.b16 %v625, %v625
        %v642 = vpack.c.b16 %v626, %v626
        %v643 = vpack.c.b16 %v627, %v627
        %v644 = vpack.c.b16 %v628, %v628
        %v645 = vpack.c.b16 %v629, %v629
        %v646 = vpack.c.b16 %v630, %v630
        %v647 = vpack.c.b16 %v631, %v631
        %v648 = vpack.c.b16 %v632, %v632
        %v649 = vpack.c.b16 %v633, %v633
        %v650 = vpack.c.b16 %v634, %v634
        %v651 = vpack.c.b16 %v635, %v635
        %v652 = vpack.c.b16 %v636, %v636
        %v653 = vpack.c.b16 %v637, %v637
        %v654 = vpack.c.b16 %v638, %v638
        %v655 = vpack.c.b16 %v639, %v639
        %672 = vst [vmem:[%s176] sm:$0xf] %v640
        %673 = vst [vmem:[%s176 + $0x4] sm:$0xf] %v641
        %674 = vst [vmem:[%s176 + $0x8] sm:$0xf] %v642
        %675 = vst [vmem:[%s176 + $0xc] sm:$0xf] %v643
        %676 = vst [vmem:[%s176 + $0x10] sm:$0xf] %v644
        %677 = vst [vmem:[%s176 + $0x14] sm:$0xf] %v645
        %678 = vst [vmem:[%s176 + $0x18] sm:$0xf] %v646
        %679 = vst [vmem:[%s176 + $0x1c] sm:$0xf] %v647
        %680 = vst [vmem:[%s176 + $0x20] sm:$0xf] %v648
        %681 = vst [vmem:[%s176 + $0x24] sm:$0xf] %v649
        %682 = vst [vmem:[%s176 + $0x28] sm:$0xf] %v650
        %683 = vst [vmem:[%s176 + $0x2c] sm:$0xf] %v651
        %684 = vst [vmem:[%s176 + $0x30] sm:$0xf] %v652
        %685 = vst [vmem:[%s176 + $0x34] sm:$0xf] %v653
        %686 = vst [vmem:[%s176 + $0x38] sm:$0xf] %v654
        %687 = vst [vmem:[%s176 + $0x3c] sm:$0xf] %v655
      $region36: #{_lambda_.2} parent=27 // pred_fallthru
        _
      %s688 = smul.u32 16, %s17
      %p689 = scmp.lt.s32.totalorder %s688, 31
      %s690 = scalar_select %p689, %s688, 31
      %s691 = smul.addr %s690, 4
      %s692 = scalar_lea.vmem %s2, %s691
      // Predicated region
      $region37: #{_lambda_.2} parent=27 // pred_check
        %p693 = pneg %p92
      $region38: #{_lambda_.2} parent=27 // pred_check_branch
        %695 = sbr.rel (%p693) target = $region40
      $region39: #{_lambda_.2} parent=27 // pred_region
        %s696 = smul.u32 16, %s17
      $region40: #{_lambda_.2} parent=27 // pred_fallthru
        _
    $region28: #{_lambda_.2} parent=5 // pred_fallthru
      _
    %p697 = scmp.le.s32.totalorder 2, %s8
    // Predicated region
    $region41: #{_lambda_.2} parent=5 // pred_check
      %p698 = pneg %p697
    $region42: #{_lambda_.2} parent=5 // pred_check_branch
      %700 = sbr.rel (%p698) target = $region44
    $region43: #{_lambda_.2} parent=5 // pred_region
      %s701 = ssub.s32 %s8, 2
      // Predicated region
      $region45: #{_lambda_.2} parent=43 // pred_check
        %p702 = pneg %p98
      $region46: #{_lambda_.2} parent=43 // pred_check_branch
        %704 = sbr.rel (%p702) target = $region48
      $region47: #{_lambda_.2} parent=43 // pred_region
        %s705 = smul.u32 16, %s19
        %p706 = scmp.lt.s32.totalorder %s705, 31
        %s707 = scalar_select %p706, %s705, 31
        %s708 = smul.addr %s707, 4
        %s709 = scalar_lea.vmem %s2, %s708
      $region48: #{_lambda_.2} parent=43 // pred_fallthru
        _
    $region44: #{_lambda_.2} parent=5 // pred_fallthru
      _
  $region6: #{_lambda_.2} parent=0 // loop_footer
    %s12 = sadd.s32 1, %s8
  $region7: #{_lambda_.2} parent=0 // loop_footer_branch
    %7 = sbr.rel target = $region3
  $region8: #{_lambda_.2} parent=0 // loop_exit
    _

</llo_original>
